<compile_context>
chip_gen: v5e
topology: v5e:2x2
jax: 0.10.0
libtpu: 0.0.40
codegen_flags: <defaults>
</compile_context>

<pallas_src>
import functools

import numpy as np
import jax
import jax.numpy as jnp
from jax.experimental import pallas as pl
from jax.experimental.pallas import tpu as pltpu


# --------------------------------------------------------------------------
# Per-generation budgets
# --------------------------------------------------------------------------
@functools.lru_cache(maxsize=1)
def _budgets():
    """Returns (vmem_limit_bytes, per-slab byte budget) from physical VMEM."""
    try:
        cap = int(pltpu.get_tpu_info().vmem_capacity_bytes)
    except Exception:                       # CPU / interpret mode / older jax
        cap = 64 * 1024 * 1024              # conservative (v7x-class)
    if cap <= 64 * 1024 * 1024:             # v7x: 64 MiB physical VMEM
        return 44 * 1024 * 1024, 4 * 1024 * 1024
    return 96 * 1024 * 1024, 8 * 1024 * 1024    # v5e / v6e: 128 MiB physical


_SEMANTICS = ("parallel", "parallel", "arbitrary")   # shard (B, S-tiles) on v7x


# --------------------------------------------------------------------------
# Pallas kernels
# --------------------------------------------------------------------------
def _att_kernel(offs_ref, rec_ref, x_ref, o_ref, q_sc, m_sc, d_sc, acc_sc, *,
                inv_sqrt_dim):
    """Online scaled-dot-product attention over the agent axis.

    x_ref block: (1, C, TS) = one agent's spatial tile.  Query = agent 0's
    tile (kept pre-scaled by 1/sqrt(C) in scratch).  Only agent-0's attention
    output is produced, matching `[0, ...].unsqueeze(0)` in the PyTorch code.
    """
    b = pl.program_id(0)
    l = pl.program_id(2)
    last = pl.num_programs(2) - 1
    n = rec_ref[b]                                    # valid agents in group b
    x = x_ref[0].astype(jnp.float32)                  # (C, TS)

    @pl.when(l == 0)
    def _init():
        q = x * inv_sqrt_dim                          # pre-scaled query
        q_sc[...] = q
        # score of agent 0 against itself (already scaled through q)
        m_sc[...] = jnp.sum(q * x, axis=0, keepdims=True)
        d_sc[...] = jnp.ones(d_sc.shape, d_sc.dtype)
        acc_sc[...] = x

    @pl.when(jnp.logical_and(l > 0, l < n))           # skip padded agents
    def _update():
        s = jnp.sum(q_sc[...] * x, axis=0, keepdims=True)    # (1, TS), scaled
        m_old = m_sc[...]
        m_new = jnp.maximum(m_old, s)
        alpha = jnp.exp(m_old - m_new)
        p = jnp.exp(s - m_new)
        d_sc[...] = alpha * d_sc[...] + p
        acc_sc[...] = alpha * acc_sc[...] + p * x
        m_sc[...] = m_new

    @pl.when(l == last)
    def _finalize():
        # Exact reciprocal: runs once per (b, s) tile, off the hot path.
        inv = pl.reciprocal(d_sc[...], approx=False)
        o_ref[0] = (acc_sc[...] * inv).astype(o_ref.dtype)


def _reduce_kernel(offs_ref, rec_ref, x_ref, o_ref, *scratch, mode):
    """Masked max / mean / both over the agent axis, fp32 scratch accumulation."""
    b = pl.program_id(0)
    l = pl.program_id(2)
    last = pl.num_programs(2) - 1
    n = rec_ref[b]
    x = x_ref[0].astype(jnp.float32)                  # (C, TS)

    if mode == "max":
        (mx_sc,) = scratch
        sm_sc = None
    elif mode == "mean":
        (sm_sc,) = scratch
        mx_sc = None
    else:                                             # "both"
        mx_sc, sm_sc = scratch

    @pl.when(l == 0)
    def _init():
        if mx_sc is not None:
            mx_sc[...] = x
        if sm_sc is not None:
            sm_sc[...] = x

    @pl.when(jnp.logical_and(l > 0, l < n))
    def _update():
        if mx_sc is not None:
            mx_sc[...] = jnp.maximum(mx_sc[...], x)
        if sm_sc is not None:
            sm_sc[...] = sm_sc[...] + x

    @pl.when(l == last)
    def _finalize():
        if mode == "max":
            o_ref[0] = mx_sc[...].astype(o_ref.dtype)
        elif mode == "mean":
            o_ref[0] = (sm_sc[...] / n.astype(jnp.float32)).astype(o_ref.dtype)
        else:   # block (1, 2, C, TS): channel 0 = max, channel 1 = mean
            o_ref[0, 0] = mx_sc[...].astype(o_ref.dtype)
            o_ref[0, 1] = (sm_sc[...] / n.astype(jnp.float32)).astype(o_ref.dtype)


# --------------------------------------------------------------------------
# Wrappers
# --------------------------------------------------------------------------
def _choose_tile(S_pad, C, itemsize, slab_bytes, B):
    """Largest lane tile TS (multiple of 128, dividing S_pad) with
    C*TS*itemsize <= slab_bytes, while keeping B*(S_pad//TS) >= 2 when possible
    so both TensorCores get work on v7x."""
    max_ts = max(128, (slab_bytes // (C * itemsize)) // 128 * 128)
    ts = 128
    cand = 256
    lim = min(S_pad, max_ts)
    while cand <= lim:
        if S_pad % cand == 0:
            ts = cand
        cand += 128
    # Keep at least two parallel grid points (megacore) if a smaller divisor exists.
    while B * (S_pad // ts) < 2 and ts > 128:
        nxt = ts
        cand = ts - 128
        while cand >= 128:
            if S_pad % cand == 0:
                nxt = cand
                break
            cand -= 128
        if nxt == ts:
            break
        ts = nxt
    return ts


def _prep(x, record_len):
    record_len = np.asarray(record_len, dtype=np.int64)
    assert (record_len >= 1).all(), "empty groups are not supported"
    N, C, W, H = x.shape
    S = W * H
    x_flat = x.reshape(N, C, S)                       # free reshape
    # Pad spatial axis to a multiple of 128 (lane-dense tiles, no full-S blocks).
    S_pad = ((S + 127) // 128) * 128
    if S_pad != S:
        x_flat = jnp.pad(x_flat, ((0, 0), (0, 0), (0, S_pad - S)))
    offs = np.concatenate([[0], np.cumsum(record_len)[:-1]]).astype(np.int32)
    rec = record_len.astype(np.int32)
    L_max = int(record_len.max())
    return (x_flat, jnp.asarray(offs), jnp.asarray(rec), L_max,
            C, W, H, S, S_pad)


def _in_spec(C, TS):
    # Row gather of one agent's tile; padded agents clamp to the last valid row
    # (same block index as previous step -> DMA elided, compute gated in-kernel).
    # TODO(synk): if profiling shows exposed DMA at group boundaries, try
    # pipeline_mode=pl.Buffered(3) here.
    return pl.BlockSpec(
        (1, C, TS),
        lambda b, s, l, offs_r, rec_r: (offs_r[b] + jnp.minimum(l, rec_r[b] - 1), 0, s))


def _attentive_fusion(x_flat, offs, rec, L_max, C, W, H, S, S_pad):
    B = offs.shape[0]
    vmem_limit, slab = _budgets()
    TS = _choose_tile(S_pad, C, jnp.dtype(x_flat.dtype).itemsize, slab, B)
    n_s = S_pad // TS
    kernel = functools.partial(_att_kernel, inv_sqrt_dim=float(1.0 / np.sqrt(C)))
    out = pl.pallas_call(
        kernel,
        out_shape=jax.ShapeDtypeStruct((B, C, S_pad), x_flat.dtype),
        grid_spec=pltpu.PrefetchScalarGridSpec(
            num_scalar_prefetch=2,
            grid=(B, n_s, L_max),
            in_specs=[_in_spec(C, TS)],
            out_specs=pl.BlockSpec((1, C, TS), lambda b, s, l, o, r: (b, 0, s)),
            scratch_shapes=[
                pltpu.VMEM((C, TS), jnp.float32),     # q (agent 0, pre-scaled)
                pltpu.VMEM((1, TS), jnp.float32),     # running max
                pltpu.VMEM((1, TS), jnp.float32),     # running denom
                pltpu.VMEM((C, TS), jnp.float32),     # running context
            ]),
        compiler_params=pltpu.CompilerParams(
            dimension_semantics=_SEMANTICS, vmem_limit_bytes=vmem_limit),
    )(offs, rec, x_flat)
    return out[..., :S].reshape(B, C, W, H)


def _reduce_fusion(x_flat, offs, rec, L_max, C, W, H, S, S_pad, mode):
    B = offs.shape[0]
    vmem_limit, slab = _budgets()
    TS = _choose_tile(S_pad, C, jnp.dtype(x_flat.dtype).itemsize, slab, B)
    n_s = S_pad // TS
    kernel = functools.partial(_reduce_kernel, mode=mode)
    if mode == "both":
        out_shape = jax.ShapeDtypeStruct((B, 2, C, S_pad), x_flat.dtype)
        out_spec = pl.BlockSpec((1, 2, C, TS), lambda b, s, l, o, r: (b, 0, 0, s))
        scratch = [pltpu.VMEM((C, TS), jnp.float32),    # max accumulator
                   pltpu.VMEM((C, TS), jnp.float32)]    # sum accumulator
    else:
        out_shape = jax.ShapeDtypeStruct((B, C, S_pad), x_flat.dtype)
        out_spec = pl.BlockSpec((1, C, TS), lambda b, s, l, o, r: (b, 0, s))
        scratch = [pltpu.VMEM((C, TS), jnp.float32)]
    out = pl.pallas_call(
        kernel,
        out_shape=out_shape,
        grid_spec=pltpu.PrefetchScalarGridSpec(
            num_scalar_prefetch=2,
            grid=(B, n_s, L_max),
            in_specs=[_in_spec(C, TS)],
            out_specs=out_spec,
            scratch_shapes=scratch),
        compiler_params=pltpu.CompilerParams(
            dimension_semantics=_SEMANTICS, vmem_limit_bytes=vmem_limit),
    )(offs, rec, x_flat)
    if mode == "both":
        return out[..., :S].reshape(B, 2, C, W, H)
    return out[..., :S].reshape(B, C, W, H)


def _conv3d(x5d, w, b):
    # x5d: (B, 2, C, W, H); (C, W, H) are the 3 spatial dims, as in PyTorch Conv3d.
    y = jax.lax.conv_general_dilated(
        x5d, w, window_strides=(1, 1, 1),
        padding=((1, 1), (1, 1), (1, 1)),
        dimension_numbers=("NCDHW", "OIDHW", "NCDHW"),
    )
    return y + b.reshape(1, -1, 1, 1, 1)


def init_params(feature_dim, key=jax.random.PRNGKey(0)):
    """Deterministic params for conv3d_C (Conv3d(2, 1, k=3, p=1))."""
    k1, k2 = jax.random.split(key)
    fan_in = 2 * 3 * 3 * 3
    bound = 1.0 / np.sqrt(fan_in)
    return {
        "w3d": jax.random.uniform(k1, (1, 2, 3, 3, 3), jnp.float32, -bound, bound),
        "b3d": jax.random.uniform(k2, (1,), jnp.float32, -bound, bound),
    }


def att_fusion_forward(x, record_len, fusion_method, params):
    """JAX/Pallas equivalent of AttFusion.forward(x, record_len, fusion_method).

    x: (N, C, W, H) float32 (bf16 also accepted), N = sum(record_len).
    Note: record_len is consumed host-side; pad to a fixed (B, L_max) schedule
    in deployment to avoid per-composition recompiles.
    """
    x_flat, offs, rec, L_max, C, W, H, S, S_pad = _prep(x, record_len)
    if fusion_method == 1:
        return _attentive_fusion(x_flat, offs, rec, L_max, C, W, H, S, S_pad)
    if fusion_method == 2:
        return _reduce_fusion(x_flat, offs, rec, L_max, C, W, H, S, S_pad, "max")
    if fusion_method == 3:
        return _reduce_fusion(x_flat, offs, rec, L_max, C, W, H, S, S_pad, "mean")
    if fusion_method == 4:
        stacked = _reduce_fusion(x_flat, offs, rec, L_max, C, W, H, S, S_pad, "both")
        y = _conv3d(stacked, params["w3d"], params["b3d"])
        return jax.nn.relu(y)[:, 0]                   # (B, C, W, H)
    if fusion_method == 5:
        # TODO(synk): adaptiveFusionD builds a freshly random-initialized Conv3d
        # inside forward() each call; no deterministic semantics to reproduce.
        raise NotImplementedError("fusion_method=5 uses per-call random weights")
    return []


# --------------------------------------------------------------------------
# Pure-JAX references for verification (full f32 precision)
# --------------------------------------------------------------------------
def _ref_attentive(x, record_len):
    offs = np.concatenate([[0], np.cumsum(record_len)])
    outs = []
    for b in range(len(record_len)):
        xx = x[offs[b]:offs[b + 1]]                   # (n, C, W, H)
        n, C, W, H = xx.shape
        xf = xx.reshape(n, C, -1).transpose(2, 0, 1)  # (S, n, C)
        score = jnp.einsum("snc,smc->snm", xf, xf,
                           precision=jax.lax.Precision.HIGHEST) / np.sqrt(C)
        attn = jax.nn.softmax(score, axis=-1)
        ctx = jnp.einsum("snm,smc->snc", attn, xf,
                         precision=jax.lax.Precision.HIGHEST)
        h = ctx.transpose(1, 2, 0).reshape(n, C, W, H)[0:1]
        outs.append(h)
    return jnp.concatenate(outs, axis=0)


def _ref_maxmean(x, record_len):
    offs = np.concatenate([[0], np.cumsum(record_len)])
    mx, mn = [], []
    for b in range(len(record_len)):
        xx = x[offs[b]:offs[b + 1]]
        mx.append(jnp.max(xx, axis=0, keepdims=True))
        mn.append(jnp.mean(xx, axis=0, keepdims=True))
    return jnp.concatenate(mx, 0), jnp.concatenate(mn, 0)


# --------------------------------------------------------------------------
if __name__ == "__main__":
    # 2 groups with record_len = [3, 2]  ->  N = 5 agents total (ragged).
    record_len = [3, 2]
    N, C, W, H = 5, 8, 16, 16
    key = jax.random.PRNGKey(0)
    x = jax.random.normal(key, (N, C, W, H), dtype=jnp.float32)
    params = init_params(C)

    # fusion_method = 1 : attentive fusion (online-softmax kernel, exact recip).
    out1 = att_fusion_forward(x, record_len, 1, params)
    jax.block_until_ready(out1)
    ref1 = _ref_attentive(x, record_len)
    np.testing.assert_allclose(np.asarray(out1), np.asarray(ref1),
                               rtol=1e-4, atol=1e-5)

    # fusion_method = 2 / 3 : masked max / mean (fp32-scratch reduce kernels)
    out2 = att_fusion_forward(x, record_len, 2, params)
    out3 = att_fusion_forward(x, record_len, 3, params)
    jax.block_until_ready((out2, out3))
    rmx, rmn = _ref_maxmean(x, record_len)
    np.testing.assert_allclose(np.asarray(out2), np.asarray(rmx),
                               rtol=1e-5, atol=1e-5)
    np.testing.assert_allclose(np.asarray(out3), np.asarray(rmn),
                               rtol=1e-5, atol=1e-5)

    # fusion_method = 4 : fused max+mean kernel writing (B, 2, C, S) + conv3d + relu
    out4 = att_fusion_forward(x, record_len, 4, params)
    jax.block_until_ready(out4)
    ref_stacked = jnp.stack([rmx, rmn], axis=1)       # (B, 2, C, W, H)
    ref4 = jax.nn.relu(_conv3d(ref_stacked, params["w3d"], params["b3d"]))[:, 0]
    np.testing.assert_allclose(np.asarray(out4), np.asarray(ref4),
                               rtol=1e-4, atol=1e-4)
    assert out4.shape == (len(record_len), C, W, H)

    print("KERNEL_OK")
</pallas_src>

<mosaic_0001>
module attributes {stable_mosaic.version = 11 : i64} {
  func.func @_att_kernel(%arg0: i32, %arg1: i32, %arg2: i32, %arg3: memref<2xi32, #tpu.memory_space<smem>>, %arg4: memref<2xi32, #tpu.memory_space<smem>>, %arg5: memref<1x8x256xf32, #tpu.memory_space<vmem>>, %arg6: memref<1x8x256xf32, #tpu.memory_space<vmem>>, %arg7: memref<8x256xf32, #tpu.memory_space<vmem>>, %arg8: memref<1x256xf32, #tpu.memory_space<vmem>>, %arg9: memref<1x256xf32, #tpu.memory_space<vmem>>, %arg10: memref<8x256xf32, #tpu.memory_space<vmem>>) attributes {dimension_semantics = [#tpu.dimension_semantics<parallel>, #tpu.dimension_semantics<parallel>, #tpu.dimension_semantics<arbitrary>], iteration_bounds = array<i64: 2, 1, 3>, scalar_prefetch = 2 : i64, scratch_operands = 4 : i64, tpu.core_type = #tpu.core_type<tc>, window_params = [{transform_indices = @transform_0, window_bounds = array<i64: 1, 8, 256>}, {transform_indices = @transform_1, window_bounds = array<i64: 1, 8, 256>}]} {
    %0 = arith.index_cast %arg0 : i32 to index
    %1 = memref.load %arg4[%0] : memref<2xi32, #tpu.memory_space<smem>>
    %c0 = arith.constant 0 : index
    %c0_0 = arith.constant 0 : index
    %c0_1 = arith.constant 0 : index
    %2 = vector.load %arg5[%c0, %c0_0, %c0_1] : memref<1x8x256xf32, #tpu.memory_space<vmem>>, vector<1x8x256xf32>
    %3 = vector.shape_cast %2 : vector<1x8x256xf32> to vector<8x256xf32>
    %c0_i32 = arith.constant 0 : i32
    %4 = arith.cmpi eq, %arg2, %c0_i32 : i32
    %5 = arith.extui %4 : i1 to i32
    %c0_i32_2 = arith.constant 0 : i32
    %6 = arith.cmpi ne, %5, %c0_i32_2 : i32
    scf.if %6 {
      %cst = arith.constant 0.353553385 : f32
      %15 = vector.broadcast %cst : f32 to vector<8x256xf32>
      %16 = arith.mulf %3, %15 : vector<8x256xf32>
      %c0_6 = arith.constant 0 : index
      %c0_7 = arith.constant 0 : index
      %17 = vector.load %arg7[%c0_6, %c0_7] : memref<8x256xf32, #tpu.memory_space<vmem>>, vector<8x256xf32>
      tpu.vector_store %arg7[%c0_6, %c0_7], %16 {strides = array<i32>} : memref<8x256xf32, #tpu.memory_space<vmem>>, vector<8x256xf32>,
      %18 = arith.mulf %16, %3 : vector<8x256xf32>
      %cst_8 = arith.constant dense<0.000000e+00> : vector<256xf32>
      %19 = vector.multi_reduction <add>, %18, %cst_8 [0] : vector<8x256xf32> to vector<256xf32>
      %20 = vector.shape_cast %19 : vector<256xf32> to vector<1x256xf32>
      %c0_9 = arith.constant 0 : index
      %c0_10 = arith.constant 0 : index
      %21 = vector.load %arg8[%c0_9, %c0_10] : memref<1x256xf32, #tpu.memory_space<vmem>>, vector<1x256xf32>
      tpu.vector_store %arg8[%c0_9, %c0_10], %20 {strides = array<i32>} : memref<1x256xf32, #tpu.memory_space<vmem>>, vector<1x256xf32>,
      %cst_11 = arith.constant 1.000000e+00 : f32
      %22 = vector.broadcast %cst_11 : f32 to vector<1x256xf32>
      %c0_12 = arith.constant 0 : index
      %c0_13 = arith.constant 0 : index
      %23 = vector.load %arg9[%c0_12, %c0_13] : memref<1x256xf32, #tpu.memory_space<vmem>>, vector<1x256xf32>
      tpu.vector_store %arg9[%c0_12, %c0_13], %22 {strides = array<i32>} : memref<1x256xf32, #tpu.memory_space<vmem>>, vector<1x256xf32>,
      %c0_14 = arith.constant 0 : index
      %c0_15 = arith.constant 0 : index
      %24 = vector.load %arg10[%c0_14, %c0_15] : memref<8x256xf32, #tpu.memory_space<vmem>>, vector<8x256xf32>
      tpu.vector_store %arg10[%c0_14, %c0_15], %3 {strides = array<i32>} : memref<8x256xf32, #tpu.memory_space<vmem>>, vector<8x256xf32>,
    } else {
    }
    %c0_i32_3 = arith.constant 0 : i32
    %7 = arith.cmpi sgt, %arg2, %c0_i32_3 : i32
    %8 = arith.cmpi slt, %arg2, %1 : i32
    %9 = arith.andi %7, %8 : i1
    %10 = arith.extui %9 : i1 to i32
    %c0_i32_4 = arith.constant 0 : i32
    %11 = arith.cmpi ne, %10, %c0_i32_4 : i32
    scf.if %11 {
      %c0_6 = arith.constant 0 : index
      %c0_7 = arith.constant 0 : index
      %15 = vector.load %arg7[%c0_6, %c0_7] : memref<8x256xf32, #tpu.memory_space<vmem>>, vector<8x256xf32>
      %16 = arith.mulf %15, %3 : vector<8x256xf32>
      %cst = arith.constant dense<0.000000e+00> : vector<256xf32>
      %17 = vector.multi_reduction <add>, %16, %cst [0] : vector<8x256xf32> to vector<256xf32>
      %18 = vector.shape_cast %17 : vector<256xf32> to vector<1x256xf32>
      %c0_8 = arith.constant 0 : index
      %c0_9 = arith.constant 0 : index
      %19 = vector.load %arg8[%c0_8, %c0_9] : memref<1x256xf32, #tpu.memory_space<vmem>>, vector<1x256xf32>
      %20 = arith.maximumf %19, %18 : vector<1x256xf32>
      %21 = arith.subf %19, %20 : vector<1x256xf32>
      %22 = math.exp %21 : vector<1x256xf32>
      %23 = arith.subf %18, %20 : vector<1x256xf32>
      %24 = math.exp %23 : vector<1x256xf32>
      %c0_10 = arith.constant 0 : index
      %c0_11 = arith.constant 0 : index
      %25 = vector.load %arg9[%c0_10, %c0_11] : memref<1x256xf32, #tpu.memory_space<vmem>>, vector<1x256xf32>
      %26 = arith.mulf %22, %25 : vector<1x256xf32>
      %27 = arith.addf %26, %24 : vector<1x256xf32>
      %c0_12 = arith.constant 0 : index
      %c0_13 = arith.constant 0 : index
      %28 = vector.load %arg9[%c0_12, %c0_13] : memref<1x256xf32, #tpu.memory_space<vmem>>, vector<1x256xf32>
      tpu.vector_store %arg9[%c0_12, %c0_13], %27 {strides = array<i32>} : memref<1x256xf32, #tpu.memory_space<vmem>>, vector<1x256xf32>,
      %c0_14 = arith.constant 0 : index
      %c0_15 = arith.constant 0 : index
      %29 = vector.load %arg10[%c0_14, %c0_15] : memref<8x256xf32, #tpu.memory_space<vmem>>, vector<8x256xf32>
      %30 = vector.broadcast %22 : vector<1x256xf32> to vector<8x256xf32>
      %31 = arith.mulf %30, %29 : vector<8x256xf32>
      %32 = vector.broadcast %24 : vector<1x256xf32> to vector<8x256xf32>
      %33 = arith.mulf %32, %3 : vector<8x256xf32>
      %34 = arith.addf %31, %33 : vector<8x256xf32>
      %c0_16 = arith.constant 0 : index
      %c0_17 = arith.constant 0 : index
      %35 = vector.load %arg10[%c0_16, %c0_17] : memref<8x256xf32, #tpu.memory_space<vmem>>, vector<8x256xf32>
      tpu.vector_store %arg10[%c0_16, %c0_17], %34 {strides = array<i32>} : memref<8x256xf32, #tpu.memory_space<vmem>>, vector<8x256xf32>,
      %c0_18 = arith.constant 0 : index
      %c0_19 = arith.constant 0 : index
      %36 = vector.load %arg8[%c0_18, %c0_19] : memref<1x256xf32, #tpu.memory_space<vmem>>, vector<1x256xf32>
      tpu.vector_store %arg8[%c0_18, %c0_19], %20 {strides = array<i32>} : memref<1x256xf32, #tpu.memory_space<vmem>>, vector<1x256xf32>,
    } else {
    }
    %c2_i32 = arith.constant 2 : i32
    %12 = arith.cmpi eq, %arg2, %c2_i32 : i32
    %13 = arith.extui %12 : i1 to i32
    %c0_i32_5 = arith.constant 0 : i32
    %14 = arith.cmpi ne, %13, %c0_i32_5 : i32
    scf.if %14 {
      %c0_6 = arith.constant 0 : index
      %c0_7 = arith.constant 0 : index
      %15 = vector.load %arg9[%c0_6, %c0_7] : memref<1x256xf32, #tpu.memory_space<vmem>>, vector<1x256xf32>
      %16 = tpu.reciprocal %15 : vector<1x256xf32> -> vector<1x256xf32>
      %c0_8 = arith.constant 0 : index
      %c0_9 = arith.constant 0 : index
      %17 = vector.load %arg10[%c0_8, %c0_9] : memref<8x256xf32, #tpu.memory_space<vmem>>, vector<8x256xf32>
      %18 = vector.broadcast %16 : vector<1x256xf32> to vector<8x256xf32>
      %19 = arith.mulf %17, %18 : vector<8x256xf32>
      %c0_10 = arith.constant 0 : index
      %c0_11 = arith.constant 0 : index
      %c0_12 = arith.constant 0 : index
      %20 = vector.load %arg6[%c0_10, %c0_11, %c0_12] : memref<1x8x256xf32, #tpu.memory_space<vmem>>, vector<1x8x256xf32>
      %21 = vector.shape_cast %20 : vector<1x8x256xf32> to vector<8x256xf32>
      %22 = vector.shape_cast %19 : vector<8x256xf32> to vector<1x8x256xf32>
      tpu.vector_store %arg6[%c0_10, %c0_11, %c0_12], %22 {strides = array<i32>} : memref<1x8x256xf32, #tpu.memory_space<vmem>>, vector<1x8x256xf32>,
    } else {
    }
    return
  }
  func.func @transform_0(%arg0: i32, %arg1: i32, %arg2: i32, %arg3: memref<2xi32, #tpu.memory_space<smem>>, %arg4: memref<2xi32, #tpu.memory_space<smem>>) -> (i32, i32, i32) {
    %0 = arith.index_cast %arg0 : i32 to index
    %1 = memref.load %arg3[%0] : memref<2xi32, #tpu.memory_space<smem>>
    %2 = arith.index_cast %arg0 : i32 to index
    %3 = memref.load %arg4[%2] : memref<2xi32, #tpu.memory_space<smem>>
    %c1_i32 = arith.constant 1 : i32
    %4 = arith.subi %3, %c1_i32 : i32
    %5 = arith.minsi %arg2, %4 : i32
    %6 = arith.addi %1, %5 : i32
    %c0_i32 = arith.constant 0 : i32
    %c0_i32_0 = arith.constant 0 : i32
    return %6, %c0_i32, %arg1 : i32, i32, i32
  }
  func.func @transform_1(%arg0: i32, %arg1: i32, %arg2: i32, %arg3: memref<2xi32, #tpu.memory_space<smem>>, %arg4: memref<2xi32, #tpu.memory_space<smem>>) -> (i32, i32, i32) {
    %c0_i32 = arith.constant 0 : i32
    %c0_i32_0 = arith.constant 0 : i32
    return %arg0, %c0_i32, %arg1 : i32, i32, i32
  }
}

</mosaic_0001>

<llo_original>
// kernel: tpu_custom_call.1
$region0: #{tpu_custom_call.1}
  #allocation0 [shape = 'u32[]', space=smem, size = 0x4, offset = 0x4, fixed_abs, tag = 'smem constant byte address 0x4 - core index']
  #allocation1 [shape = 'u32[72,128]{1,0:T(1,128)}', space=vmem, size = 0x9000, scoped, tag = 'internal scratch']
  #allocation2 [shape = 'f32[8,256]{1,0:T(8,128)}', space=vmem, size = 0x2000, scoped, tag = 'scratch operand']
  #allocation3 [shape = 'f32[1,256]{1,0:T(1,128)}', space=vmem, size = 0x400, scoped, tag = 'scratch operand']
  #allocation4 [shape = 'f32[1,256]{1,0:T(1,128)}', space=vmem, size = 0x400, scoped, tag = 'scratch operand']
  #allocation5 [shape = 'f32[8,256]{1,0:T(8,128)}', space=vmem, size = 0x2000, scoped, tag = 'scratch operand']
  #allocation6 [shape = 's32[1]{0}', space=sflag, size = 0x4, scoped, tag = 'scoped memory for tpu_custom_call.1']
  #allocation7 [shape = 'u8[512]{0}', space=smem, size = 0x200, scoped, tag = 'prefetched SMEM operand 0']
  #allocation8 [shape = 'u8[512]{0}', space=smem, size = 0x200, scoped, tag = 'prefetched SMEM operand 1']
  %s0 = inlined_call_operand.hbm [shape: s32[2], index: 0, kind: input, shape index: {}]
  %s1 = inlined_call_operand.hbm [shape: s32[2], index: 1, kind: input, shape index: {}]
  %s2 = inlined_call_operand.hbm [shape: f32[5,8,256], index: 2, kind: input, shape index: {}]
  %s3 = inlined_call_operand.hbm [shape: f32[2,8,256], index: 3, kind: output, shape index: {}]
  %s4 = sld [smem:[#allocation0]]
  $region53: #{tpu_custom_call.1} parent=0
    _
  %s6 = ssub.s32 1, %s4
  %s7 = scalar_select 0, %s6, %s4
  %s9 = sshll.u32 %s0, 4
  %s10 = int_to_ptr.hbm [resolvable:$true] %s9
  %12 = dma.hbm_to_smem %s10, 16, [#allocation7], [#allocation6]
  %s14 = sshll.u32 %s1, 4
  %s15 = int_to_ptr.hbm [resolvable:$true] %s14
  %17 = dma.hbm_to_smem %s15, 16, [#allocation8], [#allocation6]
  %19 = dma.done [#allocation6], 32
  %20 = sfence
  $region1: #{tpu_custom_call.1} parent=0
    #allocation9 [shape = 'u8[16384]{0}', space=vmem, size = 0x4000, scoped, tag = 'input window, operand 2']
    #allocation10 [shape = 's32[2]{0}', space=sflag, size = 0x8, scoped, tag = 'scoped memory for tpu_custom_call.1']
    #allocation11 [shape = 's32[2]{0}', space=sflag, size = 0x8, scoped, tag = 'scoped memory for tpu_custom_call.1']
    #allocation12 [shape = 'u8[16384]{0}', space=vmem, size = 0x4000, scoped, tag = 'output window, operand 0']
    %21 = vsyncpa [#allocation10], 0
    %s22 = scalar_lea.sflag [#allocation10], 1
    %23 = vsyncpa %s22, 0
    %24 = vsyncpa [#allocation11], 0
    %s25 = scalar_lea.sflag [#allocation11], 1
    %26 = vsyncpa %s25, 0
    loop: start=0, step=1, limit=8
    $region2: #{tpu_custom_call.1} parent=1 // loop_pre_header
      _
    $region3: #{tpu_custom_call.1} parent=1 // loop_header
      %s28 = sphi 0, %s32
      %p29 = scmp.ge.s32.totalorder %s28, 8
      %s35 = sphi 0, %s54
      %s36 = sphi 0, %s50
      %s37 = sphi 0, %s46
      %s38 = sphi 0, %s35
      %s39 = sphi 0, %s36
      %s40 = sphi 0, %s37
      %s41 = sphi 0, %s38
      %s42 = sphi 0, %s39
      %s43 = sphi 0, %s40
      %s71 = sphi 0, %s73
      %s74 = sphi 0, %s71
      %s75 = sphi 0, %s74
      %s91 = sphi 0, %s75
      %s99 = sphi 0, %s101
      %s102 = sphi 0, %s99
      %s103 = sphi 0, %s102
      %s119 = sphi 0, %s103
    $region4: #{tpu_custom_call.1} parent=1 // loop_header_branch
      %31 = sbr.rel (%p29) target = $region8
    $region5: #{tpu_custom_call.1} parent=1 // loop_body
      %s33 = ssub.s32 %s28, 1
      %s34 = ssub.s32 %s28, 2
      %s44 = sadd.s32 1, %s37
      %p45 = scmp.ge.s32.totalorder %s44, 3
      %s46 = scalar_select %p45, 0, %s44
      %s47 = sadd.s32 1, %s36
      %s48 = scalar_select %p45, %s47, %s36
      %p49 = scmp.ge.s32.totalorder %s48, 1
      %s50 = scalar_select %p49, 0, %s48
      %s51 = sadd.s32 1, %s35
      %s52 = scalar_select %p49, %s51, %s35
      %p53 = scmp.ge.s32.totalorder %s52, 2
      %s54 = scalar_select %p53, 0, %s52
      %s55 = sld [smem:[#allocation7 + %s35]]
      %s56 = sld [smem:[#allocation8 + %s35]]
      %s57 = ssub.s32 %s56, 1
      %p58 = scmp.lt.s32.totalorder %s37, %s57
      %s59 = scalar_select %p58, %s37, %s57
      %s60 = sadd.s32 %s55, %s59
      %s61 = sld [smem:[#allocation7 + %s54]]
      %s62 = sld [smem:[#allocation8 + %s54]]
      %s63 = ssub.s32 %s62, 1
      %p64 = scmp.lt.s32.totalorder %s46, %s63
      %s65 = scalar_select %p64, %s46, %s63
      %s66 = sadd.s32 %s61, %s65
      %s67 = ssub.s32 %s60, %s66
      %s68 = ssub.s32 %s36, %s50
      %s69 = sor.u32 %s67, %s68
      %p70 = scmp.eq.s32.totalorder %s69, 0
      %s72 = sadd.s32 %s71, 1
      %s73 = scalar_select %p70, %s71, %s72
      %p76 = pneg %p70
      %p77 = scmp.eq.s32.totalorder %s28, 5
      %p78 = por %p76, %p77
      %p79 = scmp.ne.s32.totalorder %s71, %s74
      %p80 = scmp.eq.s32.totalorder %s28, 0
      %p81 = por %p79, %p80
      %p82 = scmp.ne.s32.totalorder %s71, %s74
      %p83 = scmp.eq.s32.totalorder %s33, 5
      %p84 = por %p82, %p83
      %p85 = scmp.ne.s32.totalorder %s74, %s75
      %p86 = scmp.eq.s32.totalorder %s33, 0
      %p87 = por %p85, %p86
      %p88 = scmp.ne.s32.totalorder %s74, %s75
      %p89 = scmp.eq.s32.totalorder %s34, 5
      %p90 = por %p88, %p89
      %p92 = scmp.ne.s32.totalorder %s75, %s91
      %p93 = scmp.eq.s32.totalorder %s34, 0
      %p94 = por %p92, %p93
      %s95 = ssub.s32 %s35, %s54
      %s96 = ssub.s32 %s36, %s50
      %s97 = sor.u32 %s95, %s96
      %p98 = scmp.eq.s32.totalorder %s97, 0
      %s100 = sadd.s32 %s99, 1
      %s101 = scalar_select %p98, %s99, %s100
      %p104 = pneg %p98
      %p105 = scmp.eq.s32.totalorder %s28, 5
      %p106 = por %p104, %p105
      %p107 = scmp.ne.s32.totalorder %s99, %s102
      %p108 = scmp.eq.s32.totalorder %s28, 0
      %p109 = por %p107, %p108
      %p110 = scmp.ne.s32.totalorder %s99, %s102
      %p111 = scmp.eq.s32.totalorder %s33, 5
      %p112 = por %p110, %p111
      %p113 = scmp.ne.s32.totalorder %s102, %s103
      %p114 = scmp.eq.s32.totalorder %s33, 0
      %p115 = por %p113, %p114
      %p116 = scmp.ne.s32.totalorder %s102, %s103
      %p117 = scmp.eq.s32.totalorder %s34, 5
      %p118 = por %p116, %p117
      %p120 = scmp.ne.s32.totalorder %s103, %s119
      %p121 = scmp.eq.s32.totalorder %s34, 0
      %p122 = por %p120, %p121
      %p123 = scmp.le.s32.totalorder 1, %s28
      %p124 = scmp.lt.s32.totalorder %s28, 7
      %p125 = pnand %p123, %p124
      %p126 = pneg %p125
      // Predicated region
      $region9: #{tpu_custom_call.1} parent=5 // pred_check
        _
      $region10: #{tpu_custom_call.1} parent=5 // pred_check_branch
        %128 = sbr.rel (%p125) target = $region12
      $region11: #{tpu_custom_call.1} parent=5 // pred_region
        %s129 = ssub.s32 %s28, 1
      $region12: #{tpu_custom_call.1} parent=5 // pred_fallthru
        _
      %p130 = scmp.lt.s32.totalorder %s28, 6
      // Predicated region
      $region13: #{tpu_custom_call.1} parent=5 // pred_check
        %p131 = pneg %p130
      $region14: #{tpu_custom_call.1} parent=5 // pred_check_branch
        %133 = sbr.rel (%p131) target = $region16
      $region15: #{tpu_custom_call.1} parent=5 // pred_region
        // Predicated region
        $region17: #{tpu_custom_call.1} parent=15 // pred_check
          %p134 = pneg %p81
        $region18: #{tpu_custom_call.1} parent=15 // pred_check_branch
          %136 = sbr.rel (%p134) target = $region20
        $region19: #{tpu_custom_call.1} parent=15 // pred_region
          %s137 = sand.u32 %s71, 1
          %s138 = scalar_lea.sflag [#allocation10], %s137
          %s139 = sand.u32 %s71, 1
          %s140 = smul.addr %s139, 16
          %s141 = scalar_lea.vmem [#allocation9], %s140
          %s142 = sld [smem:[#allocation7 + %s35]]
          %s143 = sld [smem:[#allocation8 + %s35]]
          %s144 = ssub.s32 %s143, 1
          %p145 = scmp.lt.s32.totalorder %s37, %s144
          %s146 = scalar_select %p145, %s37, %s144
          %s147 = sadd.s32 %s142, %s146
          %s148 = smul.u32 2, %s36
          %150 = vsyncadd %s138, 0
          %s151 = smul.addr %s147, 2
          %s152 = sadd.s32 %s148, %s151
          %s153 = smul.addr %s152, 8
          %s154 = scalar_lea.hbm %s2, %s153
          %s156 = sshll.u32 %s154, 4
          %s157 = int_to_ptr.hbm [resolvable:$true] %s156
          %s158 = sshll.u32 %s141, 4
          %s159 = int_to_ptr.vmem [resolvable:$true] %s158
          %161 = dma.hbm_to_vmem [thread:$0]  %s157, 256, %s159, %s138
        $region20: #{tpu_custom_call.1} parent=15 // pred_fallthru
          _
      $region16: #{tpu_custom_call.1} parent=5 // pred_fallthru
        _
      %p162 = scmp.le.s32.totalorder 1, %s28
      %p163 = scmp.lt.s32.totalorder %s28, 7
      %p164 = pnand %p162, %p163
      %p165 = pneg %p164
      // Predicated region
      $region21: #{tpu_custom_call.1} parent=5 // pred_check
        _
      $region22: #{tpu_custom_call.1} parent=5 // pred_check_branch
        %167 = sbr.rel (%p164) target = $region24
      $region23: #{tpu_custom_call.1} parent=5 // pred_region
        %s168 = ssub.s32 %s28, 1
        %s169 = sand.u32 %s74, 1
        %s170 = scalar_lea.sflag [#allocation10], %s169
        %s171 = sand.u32 %s74, 1
        %s172 = smul.addr %s171, 16
        %s173 = scalar_lea.vmem [#allocation9], %s172
        // Predicated region
        $region25: #{tpu_custom_call.1} parent=23 // pred_check
          %p174 = pneg %p87
        $region26: #{tpu_custom_call.1} parent=23 // pred_check_branch
          %176 = sbr.rel (%p174) target = $region28
        $region27: #{tpu_custom_call.1} parent=23 // pred_region
          %178 = dma.done %s170, 256
        $region28: #{tpu_custom_call.1} parent=23 // pred_fallthru
          _
        %s179 = sand.u32 %s74, 1
        %s180 = scalar_lea.sflag [#allocation10], %s179
        %s181 = sand.u32 %s74, 1
        %s182 = smul.addr %s181, 16
        %s183 = scalar_lea.vmem [#allocation9], %s182
        %p184 = pneg %p87
        %p185 = pneg %p84
        %p186 = pneg %p115
        %p187 = pneg %p112
        %s188 = sand.u32 %s102, 1
        %s189 = scalar_lea.sflag [#allocation11], %s188
        %s190 = sand.u32 %s102, 1
        %s191 = smul.addr %s190, 16
        %s192 = scalar_lea.vmem [#allocation12], %s191
        %s193 = sld [smem:[#allocation7 + %s38]]
        %s194 = sld [smem:[#allocation8 + %s38]]
        %s195 = ssub.s32 %s194, 1
        %p196 = scmp.lt.s32.totalorder %s40, %s195
        %s197 = scalar_select %p196, %s40, %s195
        %s198 = sadd.s32 %s193, %s197
        %s199 = smul.u32 2, %s39
        %s200 = smul.u32 2, %s39
        %s201 = sld [smem:[#allocation8 + %s38]]
        %v202 = vld [vmem:[%s173] sm:$0xff]
        %v203 = vld [vmem:[%s173 + $0x8] sm:$0xff]
        %p204 = scmp.eq.s32.totalorder %s40, 0
        // Predicated region
        $region29: #{tpu_custom_call.1} parent=23 // pred_check
          %p205 = pneg %p204
        $region30: #{tpu_custom_call.1} parent=23 // pred_check_branch
          %207 = sbr.rel (%p205) target = $region32
        $region31: #{tpu_custom_call.1} parent=23 // pred_region
          %v208 = vmul.f32 %v202, 0.35355338
          %v209 = vmul.f32 %v203, 0.35355338
          %210 = vst [vmem:[#allocation2] sm:$0xff] %v208
          %211 = vst [vmem:[#allocation2 + $0x8] sm:$0xff] %v209
          %v212 = vmul.f32 %v208, %v202
          %v213 = vmul.f32 %v209, %v203
          %v214 = vrot.slane %v212, 4
          %v215 = vadd.f32 %v212, %v214
          %v216 = vrot.slane %v215, 2
          %v217 = vadd.f32 %v215, %v216
          %v218 = vrot.slane %v217, 1
          %v219 = vadd.f32 %v217, %v218
          %v220 = vrot.slane %v213, 4
          %v221 = vadd.f32 %v213, %v220
          %v222 = vrot.slane %v221, 2
          %v223 = vadd.f32 %v221, %v222
          %v224 = vrot.slane %v223, 1
          %v225 = vadd.f32 %v223, %v224
          %v228 = vrot.slane %v225, 7
          %vm229 = vcmask 1040384
          %v230 = vsel %vm229, %v219, %v228
          %v232 = vlaneseq
          %vm233 = vcmp.ge.s32.totalorder %v232, 0
          %vm234 = vcmp.lt.s32.totalorder %v232, 256
          %vm235 = vmand %vm233, %vm234
          %236 = vst.msk [vmem:[#allocation3] sm:$0x3] %vm235, %v230
          %237 = vst.msk [vmem:[#allocation4] sm:$0x3] %vm235, 1.0
          %238 = vst [vmem:[#allocation5] sm:$0xff] %v202
          %239 = vst [vmem:[#allocation5 + $0x8] sm:$0xff] %v203
        $region32: #{tpu_custom_call.1} parent=23 // pred_fallthru
          _
        %p240 = scmp.gt.s32.totalorder %s40, 0
        %p241 = scmp.lt.s32.totalorder %s40, %s201
        %p242 = pnand %p240, %p241
        %p243 = pneg %p242
        // Predicated region
        $region33: #{tpu_custom_call.1} parent=23 // pred_check
          _
        $region34: #{tpu_custom_call.1} parent=23 // pred_check_branch
          %245 = sbr.rel (%p242) target = $region36
        $region35: #{tpu_custom_call.1} parent=23 // pred_region
          %v246 = vld [vmem:[#allocation2] sm:$0xff]
          %v247 = vld [vmem:[#allocation2 + $0x8] sm:$0xff]
          %v248 = vmul.f32 %v246, %v202
          %v249 = vmul.f32 %v247, %v203
          %v250 = vrot.slane %v248, 4
          %v251 = vadd.f32 %v248, %v250
          %v252 = vrot.slane %v251, 2
          %v253 = vadd.f32 %v251, %v252
          %v254 = vrot.slane %v253, 1
          %v255 = vadd.f32 %v253, %v254
          %v256 = vrot.slane %v249, 4
          %v257 = vadd.f32 %v249, %v256
          %v258 = vrot.slane %v257, 2
          %v259 = vadd.f32 %v257, %v258
          %v260 = vrot.slane %v259, 1
          %v261 = vadd.f32 %v259, %v260
          %v262 = vld [vmem:[#allocation3] sm:$0x3]
          %v265 = vrot.slane %v261, 7
          %vm266 = vcmask 1040384
          %v267 = vsel %vm266, %v255, %v265
          %v269 = vmax.f32 %v262, %v267
          %v270 = vsub.f32 %v262, %v269
          %v271 = vmul.f32 %v270, 1.442695
          %v272 = vpow.pop %v271
          %v274 = vperm.slane %v269, 0
          %v275 = vperm.slane %v269, 1
          %v278 = vsub.f32 %v255, %v274
          %v279 = vsub.f32 %v261, %v275
          %v280 = vmul.f32 %v278, 1.442695
          %v281 = vpow.pop %v280
          %v282 = vmul.f32 %v279, 1.442695
          %v283 = vpow.pop %v282
          %v284 = vld [vmem:[#allocation4] sm:$0x3]
          %v285 = vmul.f32 %v272, %v284
          %v288 = vrot.slane %v283, 7
          %v289 = vsel %vm266, %v281, %v288
          %v291 = vadd.f32 %v285, %v289
          %v292 = vlaneseq
          %vm293 = vcmp.ge.s32.totalorder %v292, 0
          %vm294 = vcmp.lt.s32.totalorder %v292, 256
          %vm295 = vmand %vm293, %vm294
          %296 = vst.msk [vmem:[#allocation4] sm:$0x3] %vm295, %v291
          %v297 = vld [vmem:[#allocation5] sm:$0xff]
          %v298 = vld [vmem:[#allocation5 + $0x8] sm:$0xff]
          %v300 = vperm.slane %v272, 0
          %v301 = vperm.slane %v272, 1
          %v304 = vmul.f32 %v300, %v297
          %v305 = vmul.f32 %v301, %v298
          %v306 = vperm.slane %v281, 0
          %v307 = vperm.slane %v283, 0
          %v308 = vmul.f32 %v306, %v202
          %v309 = vmul.f32 %v307, %v203
          %v310 = vadd.f32 %v304, %v308
          %v311 = vadd.f32 %v305, %v309
          %312 = vst [vmem:[#allocation5] sm:$0xff] %v310
          %313 = vst [vmem:[#allocation5 + $0x8] sm:$0xff] %v311
          %314 = vst.msk [vmem:[#allocation3] sm:$0x3] %vm295, %v269
        $region36: #{tpu_custom_call.1} parent=23 // pred_fallthru
          _
        %p315 = scmp.eq.s32.totalorder %s40, 2
        // Predicated region
        $region37: #{tpu_custom_call.1} parent=23 // pred_check
          %p316 = pneg %p315
        $region38: #{tpu_custom_call.1} parent=23 // pred_check_branch
          %318 = sbr.rel (%p316) target = $region40
        $region39: #{tpu_custom_call.1} parent=23 // pred_region
          %v319 = vld [vmem:[#allocation4] sm:$0x3]
          %v320 = vrcp.pop %v319
          %v321 = vmul.f32 %v319, %v320
          %v322 = vsub.f32 1.0, %v321
          %v323 = vmul.f32 %v320, %v322
          %v324 = vadd.f32 %v320, %v323
          %vm325 = vweird.f32 %v319
          %vm326 = vweird.f32 %v320
          %vm327 = vmor %vm325, %vm326
          %v328 = vsel %vm327, %v320, %v324
          %v329 = vand.u32 2147483647, %v319
          %vm330 = vcmp.eq.f32.partialorder %v329, 8.507059e+37
          %v331 = vand.u32 %v319, 2147483648
          %v332 = vor.u32 1.1754944e-38, %v331
          %v333 = vsel %vm330, %v332, %v328
          %v334 = vld [vmem:[#allocation5] sm:$0xff]
          %v335 = vld [vmem:[#allocation5 + $0x8] sm:$0xff]
          %v337 = vperm.slane %v333, 0
          %v338 = vperm.slane %v333, 1
          %v341 = vmul.f32 %v334, %v337
          %v342 = vmul.f32 %v335, %v338
          %343 = vst [vmem:[%s192] sm:$0xff] %v341
          %344 = vst [vmem:[%s192 + $0x8] sm:$0xff] %v342
        $region40: #{tpu_custom_call.1} parent=23 // pred_fallthru
          _
        %s345 = sand.u32 %s102, 1
        %s346 = scalar_lea.sflag [#allocation11], %s345
        %s347 = sand.u32 %s102, 1
        %s348 = smul.addr %s347, 16
        %s349 = scalar_lea.vmem [#allocation12], %s348
        // Predicated region
        $region41: #{tpu_custom_call.1} parent=23 // pred_check
          %p350 = pneg %p112
        $region42: #{tpu_custom_call.1} parent=23 // pred_check_branch
          %352 = sbr.rel (%p350) target = $region44
        $region43: #{tpu_custom_call.1} parent=23 // pred_region
          %s353 = smul.u32 2, %s39
          %355 = vsyncadd %s346, 0
          %s356 = smul.addr %s38, 2
          %s357 = sadd.s32 %s353, %s356
          %s358 = smul.addr %s357, 8
          %s359 = scalar_lea.hbm %s3, %s358
          %s361 = sshll.u32 %s349, 4
          %s362 = int_to_ptr.vmem [resolvable:$true] %s361
          %s363 = sshll.u32 %s359, 4
          %s364 = int_to_ptr.hbm [resolvable:$true] %s363
          %366 = dma.vmem_to_hbm [thread:$0]  %s362, 256, %s364, %s346
        $region44: #{tpu_custom_call.1} parent=23 // pred_fallthru
          _
      $region24: #{tpu_custom_call.1} parent=5 // pred_fallthru
        _
      %p367 = scmp.le.s32.totalorder 2, %s28
      // Predicated region
      $region45: #{tpu_custom_call.1} parent=5 // pred_check
        %p368 = pneg %p367
      $region46: #{tpu_custom_call.1} parent=5 // pred_check_branch
        %370 = sbr.rel (%p368) target = $region48
      $region47: #{tpu_custom_call.1} parent=5 // pred_region
        %s371 = ssub.s32 %s28, 2
        // Predicated region
        $region49: #{tpu_custom_call.1} parent=47 // pred_check
          %p372 = pneg %p118
        $region50: #{tpu_custom_call.1} parent=47 // pred_check_branch
          %374 = sbr.rel (%p372) target = $region52
        $region51: #{tpu_custom_call.1} parent=47 // pred_region
          %s375 = sand.u32 %s103, 1
          %s376 = scalar_lea.sflag [#allocation11], %s375
          %s377 = sand.u32 %s103, 1
          %s378 = smul.addr %s377, 16
          %s379 = scalar_lea.vmem [#allocation12], %s378
          %381 = dma.done %s376, 256
        $region52: #{tpu_custom_call.1} parent=47 // pred_fallthru
          _
      $region48: #{tpu_custom_call.1} parent=5 // pred_fallthru
        _
    $region6: #{tpu_custom_call.1} parent=1 // loop_footer
      %s32 = sadd.s32 1, %s28
    $region7: #{tpu_custom_call.1} parent=1 // loop_footer_branch
      %27 = sbr.rel target = $region3
    $region8: #{tpu_custom_call.1} parent=1 // loop_exit
      _
    %382 = vsyncpa [#allocation10], 1
    %s383 = scalar_lea.sflag [#allocation10], 1
    %384 = vsyncpa %s383, 1
    %385 = vsyncpa [#allocation11], 1
    %s386 = scalar_lea.sflag [#allocation11], 1
    %387 = vsyncpa %s386, 1

</llo_original>
